<compile_context>
chip_gen: v6e
topology: v6e:2x2x1
jax: 0.10.0
libtpu: 0.0.40
codegen_flags: <defaults>
</compile_context>

<pallas_src>
import jax
import jax.numpy as jnp
from jax import lax
from jax.experimental import pallas as pl
from jax.experimental.pallas import tpu as pltpu


def _round_up(x: int, m: int) -> int:
    return ((x + m - 1) // m) * m


def _matrix_attention_kernel(m1_ref, m2_ref, out_ref, acc_ref):
    # m1_ref: (TM, TK), m2_ref: (TN, TK), out_ref: (TM, TN), acc_ref: (TM, TN) f32
    k = pl.program_id(3)

    @pl.when(k == 0)
    def _():
        acc_ref[...] = jnp.zeros_like(acc_ref)

    # Contract over the embedding dim directly; RHS is consumed in [N, K] form
    # by the MXU, so no explicit transpose of the m2 tile is materialized.
    acc_ref[...] += lax.dot_general(
        m1_ref[...],
        m2_ref[...],
        dimension_numbers=(((1,), (1,)), ((), ())),
        preferred_element_type=jnp.float32,
    )

    @pl.when(k == pl.num_programs(3) - 1)
    def _():
        out_ref[...] = acc_ref[...].astype(out_ref.dtype)


def matrix_attention(matrix_1: jax.Array, matrix_2: jax.Array,
                     *, tm: int = 256, tn: int = 256, tk: int = 512) -> jax.Array:
    """Unnormalized dot-product attention matrix (batch, R1, R2)."""
    assert matrix_1.ndim == 3 and matrix_2.ndim == 3
    B, R1, D = matrix_1.shape
    B2, R2, D2 = matrix_2.shape
    assert B == B2 and D == D2, "batch and embedding dims must match"

    out_dtype = jnp.result_type(matrix_1.dtype, matrix_2.dtype)

    # ---- tile selection (TM sublane-aligned, TN lane-dense, TK 128-aligned) ----
    TM = tm if R1 >= tm else _round_up(R1, 8)
    R1p = _round_up(R1, TM)

    TN = tn if R2 >= tn else _round_up(R2, 128)   # keep output stores lane-dense
    R2p = _round_up(R2, TN)

    TK = tk if D > tk else D                      # only tile K when D is large
    Dp = _round_up(D, TK)

    # ---- zero-pad to tile multiples (zeros contribute 0; extra rows sliced off) ----
    def _pad3(x, r_to, d_to):
        r, d = x.shape[1], x.shape[2]
        if r == r_to and d == d_to:
            return x
        return jnp.pad(x, ((0, 0), (0, r_to - r), (0, d_to - d)))

    m1p = _pad3(matrix_1, R1p, Dp)
    m2p = _pad3(matrix_2, R2p, Dp)

    n_i, n_j, n_k = R1p // TM, R2p // TN, Dp // TK

    grid_spec = pltpu.PrefetchScalarGridSpec(
        num_scalar_prefetch=0,
        grid=(B, n_i, n_j, n_k),
        in_specs=[
            pl.BlockSpec((None, TM, TK), lambda b, i, j, k: (b, i, k)),
            pl.BlockSpec((None, TN, TK), lambda b, i, j, k: (b, j, k)),
        ],
        out_specs=pl.BlockSpec((None, TM, TN), lambda b, i, j, k: (b, i, j)),
        scratch_shapes=[pltpu.VMEM((TM, TN), jnp.float32)],
    )

    # VMEM budget: double-buffered inputs + output + f32 accumulator, with headroom.
    in_bytes = TM * TK * m1p.dtype.itemsize + TN * TK * m2p.dtype.itemsize
    out_bytes = TM * TN * jnp.dtype(out_dtype).itemsize
    acc_bytes = TM * TN * 4
    need = 2 * (in_bytes + out_bytes) + acc_bytes
    vmem_limit = int(min(max(4 * need, 16 * 1024 * 1024), 48 * 1024 * 1024))

    out_padded = pl.pallas_call(
        _matrix_attention_kernel,
        out_shape=jax.ShapeDtypeStruct((B, R1p, R2p), out_dtype),
        grid_spec=grid_spec,
        compiler_params=pltpu.CompilerParams(
            dimension_semantics=("parallel", "parallel", "parallel", "arbitrary"),
            vmem_limit_bytes=vmem_limit,
        ),
    )(m1p, m2p)

    if R1p != R1 or R2p != R2:
        out_padded = out_padded[:, :R1, :R2]
    return out_padded


def matrix_attention_ref(matrix_1: jax.Array, matrix_2: jax.Array) -> jax.Array:
    # Pure-JAX reference mirroring the PyTorch broadcast-then-dot semantics.
    tiled_1 = matrix_1[:, :, None, :]    # (B, R1, 1, D)
    tiled_2 = matrix_2[:, None, :, :]    # (B, 1, R2, D)
    return jnp.sum(tiled_1 * tiled_2, axis=-1)


if __name__ == "__main__":
    key = jax.random.PRNGKey(0)
    k1, k2, k3, k4, k5, k6 = jax.random.split(key, 6)

    # Small shape consistent with the module (batch=2, rows=8, dim=32).
    B, R1, R2, D = 2, 8, 8, 32
    m1 = jax.random.normal(k1, (B, R1, D), dtype=jnp.float32)
    m2 = jax.random.normal(k2, (B, R2, D), dtype=jnp.float32)
    out = jax.block_until_ready(matrix_attention(m1, m2))
    ref = matrix_attention_ref(m1, m2)
    assert out.shape == (B, R1, R2)
    assert jnp.allclose(out, ref, atol=1e-5, rtol=1e-5)

    # Ragged shape exercising row padding + lane-dense output tiling.
    B, R1, R2, D = 2, 40, 136, 64
    m1 = jax.random.normal(k3, (B, R1, D), dtype=jnp.float32)
    m2 = jax.random.normal(k4, (B, R2, D), dtype=jnp.float32)
    out = jax.block_until_ready(matrix_attention(m1, m2))
    ref = matrix_attention_ref(m1, m2)
    assert out.shape == (B, R1, R2)
    assert jnp.allclose(out, ref, atol=1e-3, rtol=1e-3)

    # Exercise the K (embedding-dim) reduction axis / accumulator path.
    B, R1, R2, D = 2, 16, 24, 320
    m1 = jax.random.normal(k5, (B, R1, D), dtype=jnp.float32)
    m2 = jax.random.normal(k6, (B, R2, D), dtype=jnp.float32)
    out = jax.block_until_ready(matrix_attention(m1, m2, tk=128))
    ref = matrix_attention_ref(m1, m2)
    assert out.shape == (B, R1, R2)
    assert jnp.allclose(out, ref, atol=1e-3, rtol=1e-3)

    print("KERNEL_OK")
</pallas_src>

<mosaic_0001>
module attributes {stable_mosaic.version = 11 : i64} {
  func.func @_matrix_attention_kernel(%arg0: i32, %arg1: i32, %arg2: i32, %arg3: i32, %arg4: memref<1x8x32xf32, #tpu.memory_space<vmem>>, %arg5: memref<1x128x32xf32, #tpu.memory_space<vmem>>, %arg6: memref<1x8x128xf32, #tpu.memory_space<vmem>>, %arg7: memref<8x128xf32, #tpu.memory_space<vmem>>) attributes {dimension_semantics = [#tpu.dimension_semantics<parallel>, #tpu.dimension_semantics<parallel>, #tpu.dimension_semantics<parallel>, #tpu.dimension_semantics<arbitrary>], iteration_bounds = array<i64: 2, 1, 1, 1>, scalar_prefetch = 0 : i64, scratch_operands = 1 : i64, tpu.core_type = #tpu.core_type<tc>, window_params = [{transform_indices = @transform_0, window_bounds = array<i64: 1, 8, 32>}, {transform_indices = @transform_1, window_bounds = array<i64: 1, 128, 32>}, {transform_indices = @transform_2, window_bounds = array<i64: 1, 8, 128>}]} {
    %c0_i32 = arith.constant 0 : i32
    %0 = arith.cmpi eq, %arg3, %c0_i32 : i32
    %1 = arith.extui %0 : i1 to i32
    %c0_i32_0 = arith.constant 0 : i32
    %2 = arith.cmpi ne, %1, %c0_i32_0 : i32
    scf.if %2 {
      %cst_12 = arith.constant 0.000000e+00 : f32
      %14 = vector.broadcast %cst_12 : f32 to vector<8x128xf32>
      %c0_13 = arith.constant 0 : index
      %c0_14 = arith.constant 0 : index
      %15 = vector.load %arg7[%c0_13, %c0_14] : memref<8x128xf32, #tpu.memory_space<vmem>>, vector<8x128xf32>
      tpu.vector_store %arg7[%c0_13, %c0_14], %14 {strides = array<i32>} : memref<8x128xf32, #tpu.memory_space<vmem>>, vector<8x128xf32>,
    } else {
    }
    %c0 = arith.constant 0 : index
    %c0_1 = arith.constant 0 : index
    %3 = vector.load %arg7[%c0, %c0_1] : memref<8x128xf32, #tpu.memory_space<vmem>>, vector<8x128xf32>
    %c0_2 = arith.constant 0 : index
    %c0_3 = arith.constant 0 : index
    %c0_4 = arith.constant 0 : index
    %4 = vector.load %arg4[%c0_2, %c0_3, %c0_4] : memref<1x8x32xf32, #tpu.memory_space<vmem>>, vector<1x8x32xf32>
    %5 = vector.shape_cast %4 : vector<1x8x32xf32> to vector<8x32xf32>
    %c0_5 = arith.constant 0 : index
    %c0_6 = arith.constant 0 : index
    %c0_7 = arith.constant 0 : index
    %6 = vector.load %arg5[%c0_5, %c0_6, %c0_7] : memref<1x128x32xf32, #tpu.memory_space<vmem>>, vector<1x128x32xf32>
    %7 = vector.shape_cast %6 : vector<1x128x32xf32> to vector<128x32xf32>
    %cst = arith.constant dense<0.000000e+00> : vector<8x128xf32>
    %8 = tpu.matmul %5, %7, %cst {dimension_numbers = #tpu.dot_dimension_numbers<[1], [1], [0], [0], [0, 0, 1, 0], [], []>} : vector<8x32xf32>, vector<128x32xf32>, vector<8x128xf32> -> vector<8x128xf32>
    %9 = arith.addf %3, %8 : vector<8x128xf32>
    %c0_8 = arith.constant 0 : index
    %c0_9 = arith.constant 0 : index
    %10 = vector.load %arg7[%c0_8, %c0_9] : memref<8x128xf32, #tpu.memory_space<vmem>>, vector<8x128xf32>
    tpu.vector_store %arg7[%c0_8, %c0_9], %9 {strides = array<i32>} : memref<8x128xf32, #tpu.memory_space<vmem>>, vector<8x128xf32>,
    %c0_i32_10 = arith.constant 0 : i32
    %11 = arith.cmpi eq, %arg3, %c0_i32_10 : i32
    %12 = arith.extui %11 : i1 to i32
    %c0_i32_11 = arith.constant 0 : i32
    %13 = arith.cmpi ne, %12, %c0_i32_11 : i32
    scf.if %13 {
      %c0_12 = arith.constant 0 : index
      %c0_13 = arith.constant 0 : index
      %14 = vector.load %arg7[%c0_12, %c0_13] : memref<8x128xf32, #tpu.memory_space<vmem>>, vector<8x128xf32>
      %c0_14 = arith.constant 0 : index
      %c0_15 = arith.constant 0 : index
      %c0_16 = arith.constant 0 : index
      %15 = vector.load %arg6[%c0_14, %c0_15, %c0_16] : memref<1x8x128xf32, #tpu.memory_space<vmem>>, vector<1x8x128xf32>
      %16 = vector.shape_cast %15 : vector<1x8x128xf32> to vector<8x128xf32>
      %17 = vector.shape_cast %14 : vector<8x128xf32> to vector<1x8x128xf32>
      tpu.vector_store %arg6[%c0_14, %c0_15, %c0_16], %17 {strides = array<i32>} : memref<1x8x128xf32, #tpu.memory_space<vmem>>, vector<1x8x128xf32>,
    } else {
    }
    return
  }
  func.func @transform_0(%arg0: i32, %arg1: i32, %arg2: i32, %arg3: i32) -> (i32, i32, i32) {
    %c0_i32 = arith.constant 0 : i32
    return %arg0, %arg1, %arg3 : i32, i32, i32
  }
  func.func @transform_1(%arg0: i32, %arg1: i32, %arg2: i32, %arg3: i32) -> (i32, i32, i32) {
    %c0_i32 = arith.constant 0 : i32
    return %arg0, %arg2, %arg3 : i32, i32, i32
  }
  func.func @transform_2(%arg0: i32, %arg1: i32, %arg2: i32, %arg3: i32) -> (i32, i32, i32) {
    %c0_i32 = arith.constant 0 : i32
    return %arg0, %arg1, %arg2 : i32, i32, i32
  }
}

</mosaic_0001>

<llo_original>
// kernel: tpu_custom_call.1
$region0: #{tpu_custom_call.1}
  #allocation0 [shape = 'u32[]', space=smem, size = 0x4, offset = 0x4, fixed_abs, tag = 'smem constant byte address 0x4 - core index']
  #allocation1 [shape = 'u32[144,128]{1,0:T(1,128)}', space=vmem, size = 0x12000, scoped, tag = 'internal scratch']
  #allocation2 [shape = 'f32[8,128]{1,0:T(8,128)}', space=vmem, size = 0x1000, scoped, tag = 'scratch operand']
  %s0 = inlined_call_operand.vmem [shape: f32[2,8,32], index: 0, kind: input, shape index: {}]
  %s1 = inlined_call_operand.vmem [shape: f32[2,128,32], index: 1, kind: input, shape index: {}]
  %s2 = inlined_call_operand.hbm [shape: f32[2,8,128], index: 2, kind: output, shape index: {}]
  %s3 = sld [smem:[#allocation0]]
  $region49: #{tpu_custom_call.1} parent=0
    _
  %s5 = ssub.s32 1, %s3
  %s6 = scalar_select 0, %s5, %s3
  $region1: #{tpu_custom_call.1} parent=0
    #allocation3 [shape = 'u8[8192]{0}', space=vmem, size = 0x2000, scoped, tag = 'output window, operand 0']
    #allocation4 [shape = 's32[2]{0}', space=sflag, size = 0x8, scoped, tag = 'scoped memory for tpu_custom_call.1']
    %7 = vsyncpa [#allocation4], 0
    %s8 = scalar_lea.sflag [#allocation4], 1
    %9 = vsyncpa %s8, 0
    loop: start=0, step=1, limit=4
    $region2: #{tpu_custom_call.1} parent=1 // loop_pre_header
      _
    $region3: #{tpu_custom_call.1} parent=1 // loop_header
      %s11 = sphi 0, %s15
      %p12 = scmp.ge.s32.totalorder %s11, 4
      %s18 = sphi 0, %s44
      %s19 = sphi 0, %s40
      %s20 = sphi 0, %s36
      %s21 = sphi 0, %s32
      %s22 = sphi 0, %s18
      %s23 = sphi 0, %s19
      %s24 = sphi 0, %s20
      %s25 = sphi 0, %s21
      %s26 = sphi 0, %s22
      %s27 = sphi 0, %s23
      %s28 = sphi 0, %s24
      %s29 = sphi 0, %s25
      %s51 = sphi 0, %s53
      %s54 = sphi 0, %s51
      %s55 = sphi 0, %s54
      %s71 = sphi 0, %s55
      %s81 = sphi 0, %s83
      %s84 = sphi 0, %s81
      %s85 = sphi 0, %s84
      %s101 = sphi 0, %s85
      %s111 = sphi 0, %s113
      %s114 = sphi 0, %s111
      %s115 = sphi 0, %s114
      %s131 = sphi 0, %s115
    $region4: #{tpu_custom_call.1} parent=1 // loop_header_branch
      %14 = sbr.rel (%p12) target = $region8
    $region5: #{tpu_custom_call.1} parent=1 // loop_body
      %s16 = ssub.s32 %s11, 1
      %s17 = ssub.s32 %s11, 2
      %s30 = sadd.s32 1, %s21
      %p31 = scmp.ge.s32.totalorder %s30, 1
      %s32 = scalar_select %p31, 0, %s30
      %s33 = sadd.s32 1, %s20
      %s34 = scalar_select %p31, %s33, %s20
      %p35 = scmp.ge.s32.totalorder %s34, 1
      %s36 = scalar_select %p35, 0, %s34
      %s37 = sadd.s32 1, %s19
      %s38 = scalar_select %p35, %s37, %s19
      %p39 = scmp.ge.s32.totalorder %s38, 1
      %s40 = scalar_select %p39, 0, %s38
      %s41 = sadd.s32 1, %s18
      %s42 = scalar_select %p39, %s41, %s18
      %p43 = scmp.ge.s32.totalorder %s42, 2
      %s44 = scalar_select %p43, 0, %s42
      %s45 = ssub.s32 %s18, %s44
      %s46 = ssub.s32 %s19, %s40
      %s47 = sor.u32 %s45, %s46
      %s48 = ssub.s32 %s21, %s32
      %s49 = sor.u32 %s47, %s48
      %p50 = scmp.eq.s32.totalorder %s49, 0
      %s52 = sadd.s32 %s51, 1
      %s53 = scalar_select %p50, %s51, %s52
      %p56 = pneg %p50
      %p57 = scmp.eq.s32.totalorder %s11, 1
      %p58 = por %p56, %p57
      %p59 = scmp.ne.s32.totalorder %s51, %s54
      %p60 = scmp.eq.s32.totalorder %s11, 0
      %p61 = por %p59, %p60
      %p62 = scmp.ne.s32.totalorder %s51, %s54
      %p63 = scmp.eq.s32.totalorder %s16, 1
      %p64 = por %p62, %p63
      %p65 = scmp.ne.s32.totalorder %s54, %s55
      %p66 = scmp.eq.s32.totalorder %s16, 0
      %p67 = por %p65, %p66
      %p68 = scmp.ne.s32.totalorder %s54, %s55
      %p69 = scmp.eq.s32.totalorder %s17, 1
      %p70 = por %p68, %p69
      %p72 = scmp.ne.s32.totalorder %s55, %s71
      %p73 = scmp.eq.s32.totalorder %s17, 0
      %p74 = por %p72, %p73
      %s75 = ssub.s32 %s18, %s44
      %s76 = ssub.s32 %s20, %s36
      %s77 = sor.u32 %s75, %s76
      %s78 = ssub.s32 %s21, %s32
      %s79 = sor.u32 %s77, %s78
      %p80 = scmp.eq.s32.totalorder %s79, 0
      %s82 = sadd.s32 %s81, 1
      %s83 = scalar_select %p80, %s81, %s82
      %p86 = pneg %p80
      %p87 = scmp.eq.s32.totalorder %s11, 1
      %p88 = por %p86, %p87
      %p89 = scmp.ne.s32.totalorder %s81, %s84
      %p90 = scmp.eq.s32.totalorder %s11, 0
      %p91 = por %p89, %p90
      %p92 = scmp.ne.s32.totalorder %s81, %s84
      %p93 = scmp.eq.s32.totalorder %s16, 1
      %p94 = por %p92, %p93
      %p95 = scmp.ne.s32.totalorder %s84, %s85
      %p96 = scmp.eq.s32.totalorder %s16, 0
      %p97 = por %p95, %p96
      %p98 = scmp.ne.s32.totalorder %s84, %s85
      %p99 = scmp.eq.s32.totalorder %s17, 1
      %p100 = por %p98, %p99
      %p102 = scmp.ne.s32.totalorder %s85, %s101
      %p103 = scmp.eq.s32.totalorder %s17, 0
      %p104 = por %p102, %p103
      %s105 = ssub.s32 %s18, %s44
      %s106 = ssub.s32 %s19, %s40
      %s107 = sor.u32 %s105, %s106
      %s108 = ssub.s32 %s20, %s36
      %s109 = sor.u32 %s107, %s108
      %p110 = scmp.eq.s32.totalorder %s109, 0
      %s112 = sadd.s32 %s111, 1
      %s113 = scalar_select %p110, %s111, %s112
      %p116 = pneg %p110
      %p117 = scmp.eq.s32.totalorder %s11, 1
      %p118 = por %p116, %p117
      %p119 = scmp.ne.s32.totalorder %s111, %s114
      %p120 = scmp.eq.s32.totalorder %s11, 0
      %p121 = por %p119, %p120
      %p122 = scmp.ne.s32.totalorder %s111, %s114
      %p123 = scmp.eq.s32.totalorder %s16, 1
      %p124 = por %p122, %p123
      %p125 = scmp.ne.s32.totalorder %s114, %s115
      %p126 = scmp.eq.s32.totalorder %s16, 0
      %p127 = por %p125, %p126
      %p128 = scmp.ne.s32.totalorder %s114, %s115
      %p129 = scmp.eq.s32.totalorder %s17, 1
      %p130 = por %p128, %p129
      %p132 = scmp.ne.s32.totalorder %s115, %s131
      %p133 = scmp.eq.s32.totalorder %s17, 0
      %p134 = por %p132, %p133
      %p135 = scmp.le.s32.totalorder 1, %s11
      %p136 = scmp.lt.s32.totalorder %s11, 3
      %p137 = pnand %p135, %p136
      %p138 = pneg %p137
      // Predicated region
      $region9: #{tpu_custom_call.1} parent=5 // pred_check
        _
      $region10: #{tpu_custom_call.1} parent=5 // pred_check_branch
        %140 = sbr.rel (%p137) target = $region12
      $region11: #{tpu_custom_call.1} parent=5 // pred_region
        %s141 = ssub.s32 %s11, 1
      $region12: #{tpu_custom_call.1} parent=5 // pred_fallthru
        _
      %p142 = scmp.lt.s32.totalorder %s11, 2
      // Predicated region
      $region13: #{tpu_custom_call.1} parent=5 // pred_check
        %p143 = pneg %p142
      $region14: #{tpu_custom_call.1} parent=5 // pred_check_branch
        %145 = sbr.rel (%p143) target = $region16
      $region15: #{tpu_custom_call.1} parent=5 // pred_region
        // Predicated region
        $region17: #{tpu_custom_call.1} parent=15 // pred_check
          %p146 = pneg %p61
        $region18: #{tpu_custom_call.1} parent=15 // pred_check_branch
          %148 = sbr.rel (%p146) target = $region20
        $region19: #{tpu_custom_call.1} parent=15 // pred_region
          %p149 = scmp.lt.s32.totalorder %s18, 1
          %s150 = scalar_select %p149, %s18, 1
          %p151 = scmp.lt.s32.totalorder %s19, 0
          %s152 = scalar_select %p151, %s19, 0
          %p153 = scmp.lt.s32.totalorder %s21, 0
          %s154 = scalar_select %p153, %s21, 0
          %s155 = sadd.s32 %s154, %s152
          %s156 = sadd.s32 %s155, %s150
          %s157 = smul.addr %s156, 8
          %s158 = scalar_lea.vmem %s0, %s157
        $region20: #{tpu_custom_call.1} parent=15 // pred_fallthru
          _
        // Predicated region
        $region21: #{tpu_custom_call.1} parent=15 // pred_check
          %p159 = pneg %p91
        $region22: #{tpu_custom_call.1} parent=15 // pred_check_branch
          %161 = sbr.rel (%p159) target = $region24
        $region23: #{tpu_custom_call.1} parent=15 // pred_region
          %s162 = smul.u32 16, %s20
          %p163 = scmp.lt.s32.totalorder %s18, 1
          %s164 = scalar_select %p163, %s18, 1
          %p165 = scmp.lt.s32.totalorder %s162, 15
          %s166 = scalar_select %p165, %s162, 15
          %p167 = scmp.lt.s32.totalorder %s21, 0
          %s168 = scalar_select %p167, %s21, 0
          %s169 = sadd.s32 %s168, %s166
          %s170 = smul.addr %s164, 16
          %s171 = sadd.s32 %s169, %s170
          %s172 = smul.addr %s171, 8
          %s173 = scalar_lea.vmem %s1, %s172
          %s174 = smul.u32 16, %s20
        $region24: #{tpu_custom_call.1} parent=15 // pred_fallthru
          _
      $region16: #{tpu_custom_call.1} parent=5 // pred_fallthru
        _
      %p175 = scmp.le.s32.totalorder 1, %s11
      %p176 = scmp.lt.s32.totalorder %s11, 3
      %p177 = pnand %p175, %p176
      %p178 = pneg %p177
      // Predicated region
      $region25: #{tpu_custom_call.1} parent=5 // pred_check
        _
      $region26: #{tpu_custom_call.1} parent=5 // pred_check_branch
        %180 = sbr.rel (%p177) target = $region28
      $region27: #{tpu_custom_call.1} parent=5 // pred_region
        %s181 = ssub.s32 %s11, 1
        %p182 = scmp.lt.s32.totalorder %s22, 1
        %s183 = scalar_select %p182, %s22, 1
        %p184 = scmp.lt.s32.totalorder %s23, 0
        %s185 = scalar_select %p184, %s23, 0
        %p186 = scmp.lt.s32.totalorder %s25, 0
        %s187 = scalar_select %p186, %s25, 0
        %s188 = sadd.s32 %s187, %s185
        %s189 = sadd.s32 %s188, %s183
        %s190 = smul.addr %s189, 8
        %s191 = scalar_lea.vmem %s0, %s190
        %p192 = pneg %p67
        %p193 = pneg %p64
        %s194 = smul.u32 16, %s24
        %p195 = scmp.lt.s32.totalorder %s22, 1
        %s196 = scalar_select %p195, %s22, 1
        %p197 = scmp.lt.s32.totalorder %s194, 15
        %s198 = scalar_select %p197, %s194, 15
        %p199 = scmp.lt.s32.totalorder %s25, 0
        %s200 = scalar_select %p199, %s25, 0
        %s201 = sadd.s32 %s200, %s198
        %s202 = smul.addr %s196, 16
        %s203 = sadd.s32 %s201, %s202
        %s204 = smul.addr %s203, 8
        %s205 = scalar_lea.vmem %s1, %s204
        %p206 = pneg %p97
        %p207 = pneg %p94
        %p208 = pneg %p127
        %p209 = pneg %p124
        %s210 = sand.u32 %s114, 1
        %s211 = scalar_lea.sflag [#allocation4], %s210
        %s212 = sand.u32 %s114, 1
        %s213 = smul.addr %s212, 8
        %s214 = scalar_lea.vmem [#allocation3], %s213
        %p215 = scmp.lt.s32.totalorder %s22, 1
        %s216 = scalar_select %p215, %s22, 1
        %p217 = scmp.lt.s32.totalorder %s23, 0
        %s218 = scalar_select %p217, %s23, 0
        %p219 = scmp.lt.s32.totalorder %s25, 0
        %s220 = scalar_select %p219, %s25, 0
        %s221 = sadd.s32 %s220, %s218
        %s222 = sadd.s32 %s221, %s216
        %s223 = smul.addr %s222, 8
        %s224 = scalar_lea.vmem %s0, %s223
        %s225 = smul.u32 16, %s24
        %p226 = scmp.lt.s32.totalorder %s22, 1
        %s227 = scalar_select %p226, %s22, 1
        %p228 = scmp.lt.s32.totalorder %s225, 15
        %s229 = scalar_select %p228, %s225, 15
        %p230 = scmp.lt.s32.totalorder %s25, 0
        %s231 = scalar_select %p230, %s25, 0
        %s232 = sadd.s32 %s231, %s229
        %s233 = smul.addr %s227, 16
        %s234 = sadd.s32 %s232, %s233
        %s235 = smul.addr %s234, 8
        %s236 = scalar_lea.vmem %s1, %s235
        %s237 = smul.u32 16, %s24
        %p238 = scmp.eq.s32.totalorder %s25, 0
        // Predicated region
        $region29: #{tpu_custom_call.1} parent=27 // pred_check
          %p239 = pneg %p238
        $region30: #{tpu_custom_call.1} parent=27 // pred_check_branch
          %241 = sbr.rel (%p239) target = $region32
        $region31: #{tpu_custom_call.1} parent=27 // pred_region
          %242 = vst [vmem:[#allocation2] sm:$0xff] 0.0
        $region32: #{tpu_custom_call.1} parent=27 // pred_fallthru
          _
        %v243 = vld [vmem:[#allocation2] sm:$0xff]
        %v244 = vld [vmem:[%s224] sm:$0xff]
        %v245 = vld [vmem:[%s236] sm:$0xff]
        %v246 = vld [vmem:[%s236 + $0x8] sm:$0xff]
        %v247 = vld [vmem:[%s236 + $0x10] sm:$0xff]
        %v248 = vld [vmem:[%s236 + $0x18] sm:$0xff]
        %v249 = vld [vmem:[%s236 + $0x20] sm:$0xff]
        %v250 = vld [vmem:[%s236 + $0x28] sm:$0xff]
        %v251 = vld [vmem:[%s236 + $0x30] sm:$0xff]
        %v252 = vld [vmem:[%s236 + $0x38] sm:$0xff]
        %v253 = vld [vmem:[%s236 + $0x40] sm:$0xff]
        %v254 = vld [vmem:[%s236 + $0x48] sm:$0xff]
        %v255 = vld [vmem:[%s236 + $0x50] sm:$0xff]
        %v256 = vld [vmem:[%s236 + $0x58] sm:$0xff]
        %v257 = vld [vmem:[%s236 + $0x60] sm:$0xff]
        %v258 = vld [vmem:[%s236 + $0x68] sm:$0xff]
        %v259 = vld [vmem:[%s236 + $0x70] sm:$0xff]
        %v260 = vld [vmem:[%s236 + $0x78] sm:$0xff]
        %vm261 = vcmask 261120
        %v263 = vsel %vm261, %v244, 0
        %v266 = vsel %vm261, %v245, 0
        %v269 = vsel %vm261, %v246, 0
        %v272 = vsel %vm261, %v247, 0
        %v275 = vsel %vm261, %v248, 0
        %v278 = vsel %vm261, %v249, 0
        %v281 = vsel %vm261, %v250, 0
        %v284 = vsel %vm261, %v251, 0
        %v287 = vsel %vm261, %v252, 0
        %v290 = vsel %vm261, %v253, 0
        %v293 = vsel %vm261, %v254, 0
        %v296 = vsel %vm261, %v255, 0
        %v299 = vsel %vm261, %v256, 0
        %v302 = vsel %vm261, %v257, 0
        %v305 = vsel %vm261, %v258, 0
        %v308 = vsel %vm261, %v259, 0
        %v311 = vsel %vm261, %v260, 0
        %313 = vmatprep.subr.mxu0 0.0
        %314 = vmatpush1.xpose.msra.mxu0 %v311
        %315 = vmatprep.subr.mxu0 0.0
        %316 = vmatpush1.xpose.msra.mxu0 %v308
        %317 = vmatprep.subr.mxu0 0.0
        %318 = vmatpush1.xpose.msra.mxu0 %v305
        %319 = vmatprep.subr.mxu0 0.0
        %320 = vmatpush1.xpose.msra.mxu0 %v302
        %321 = vmatprep.subr.mxu0 0.0
        %322 = vmatpush1.xpose.msra.mxu0 %v299
        %323 = vmatprep.subr.mxu0 0.0
        %324 = vmatpush1.xpose.msra.mxu0 %v296
        %325 = vmatprep.subr.mxu0 0.0
        %326 = vmatpush1.xpose.msra.mxu0 %v293
        %327 = vmatprep.subr.mxu0 0.0
        %328 = vmatpush1.xpose.msra.mxu0 %v290
        %329 = vmatprep.subr.mxu0 0.0
        %330 = vmatpush1.xpose.msra.mxu0 %v287
        %331 = vmatprep.subr.mxu0 0.0
        %332 = vmatpush1.xpose.msra.mxu0 %v284
        %333 = vmatprep.subr.mxu0 0.0
        %334 = vmatpush1.xpose.msra.mxu0 %v281
        %335 = vmatprep.subr.mxu0 0.0
        %336 = vmatpush1.xpose.msra.mxu0 %v278
        %337 = vmatprep.subr.mxu0 0.0
        %338 = vmatpush1.xpose.msra.mxu0 %v275
        %339 = vmatprep.subr.mxu0 0.0
        %340 = vmatpush1.xpose.msra.mxu0 %v272
        %341 = vmatprep.subr.mxu0 0.0
        %342 = vmatpush1.xpose.msra.mxu0 %v269
        %343 = vmatprep.subr.mxu0 0.0
        %344 = vmatpush1.xpose.msra.mxu0 %v266
        %345 = vmatprep.subr.mxu0 0.0
        %346 = vmatpush2.xpose.msra.mxu0 0.0
        %347 = vmatprep.subr.mxu0 0.0
        %348 = vmatpush2.xpose.msra.mxu0 0.0
        %349 = vmatprep.subr.mxu0 0.0
        %350 = vmatpush2.xpose.msra.mxu0 0.0
        %351 = vmatprep.subr.mxu0 0.0
        %352 = vmatpush2.xpose.msra.mxu0 0.0
        %353 = vmatprep.subr.mxu0 0.0
        %354 = vmatpush2.xpose.msra.mxu0 0.0
        %355 = vmatprep.subr.mxu0 0.0
        %356 = vmatpush2.xpose.msra.mxu0 0.0
        %357 = vmatprep.subr.mxu0 0.0
        %358 = vmatpush2.xpose.msra.mxu0 0.0
        %359 = vmatprep.subr.mxu0 0.0
        %360 = vmatpush2.xpose.msra.mxu0 0.0
        %361 = vmatprep.subr.mxu0 0.0
        %362 = vmatpush2.xpose.msra.mxu0 0.0
        %363 = vmatprep.subr.mxu0 0.0
        %364 = vmatpush2.xpose.msra.mxu0 0.0
        %365 = vmatprep.subr.mxu0 0.0
        %366 = vmatpush2.xpose.msra.mxu0 0.0
        %367 = vmatprep.subr.mxu0 0.0
        %368 = vmatpush2.xpose.msra.mxu0 0.0
        %369 = vmatprep.subr.mxu0 0.0
        %370 = vmatpush2.xpose.msra.mxu0 0.0
        %371 = vmatprep.subr.mxu0 0.0
        %372 = vmatpush2.xpose.msra.mxu0 0.0
        %373 = vmatprep.subr.mxu0 0.0
        %374 = vmatpush2.xpose.msra.mxu0 0.0
        %375 = vmatprep.subr.mxu0 0.0
        %376 = vmatpush2.xpose.msra.mxu0 0.0
        %377 = vmatprep.mubr.f32.mxu0 0.0
        %378 = vmatmul.mubr.f32.gmra.mxu0 %v263
        %v379 = vpop.f32.mrf.mxu0
        %v380 = vadd.f32 0.0, %v379
        %v381 = vpop.f32.mrf.mxu0
        %382 = vdwg.mxu0
        %v383 = vadd.f32 %v243, %v380
        %384 = vst [vmem:[#allocation2] sm:$0xff] %v383
        // Predicated region
        $region33: #{tpu_custom_call.1} parent=27 // pred_check
          %p385 = pneg %p238
        $region34: #{tpu_custom_call.1} parent=27 // pred_check_branch
          %387 = sbr.rel (%p385) target = $region36
        $region35: #{tpu_custom_call.1} parent=27 // pred_region
          %v388 = vld [vmem:[#allocation2] sm:$0xff]
          %389 = vst [vmem:[%s214] sm:$0xff] %v388
        $region36: #{tpu_custom_call.1} parent=27 // pred_fallthru
          _
        %s390 = sand.u32 %s114, 1
        %s391 = scalar_lea.sflag [#allocation4], %s390
        %s392 = sand.u32 %s114, 1
        %s393 = smul.addr %s392, 8
        %s394 = scalar_lea.vmem [#allocation3], %s393
        // Predicated region
        $region37: #{tpu_custom_call.1} parent=27 // pred_check
          %p395 = pneg %p124
        $region38: #{tpu_custom_call.1} parent=27 // pred_check_branch
          %397 = sbr.rel (%p395) target = $region40
        $region39: #{tpu_custom_call.1} parent=27 // pred_region
          %s399 = ssub.s32 128, 128
          %400 = vsyncadd %s391, %s399
          %s401 = sadd.s32 %s24, %s23
          %s402 = sadd.s32 %s401, %s22
          %s403 = smul.addr %s402, 128
          %s404 = scalar_lea.hbm %s2, %s403
          %s406 = sshll.u32 %s394, 4
          %s407 = int_to_ptr.vmem [resolvable:$true] %s406
          %409 = dma.vmem_to_hbm [thread:$0]  %s407, 128, %s404, %s391
        $region40: #{tpu_custom_call.1} parent=27 // pred_fallthru
          _
      $region28: #{tpu_custom_call.1} parent=5 // pred_fallthru
        _
      %p410 = scmp.le.s32.totalorder 2, %s11
      // Predicated region
      $region41: #{tpu_custom_call.1} parent=5 // pred_check
        %p411 = pneg %p410
      $region42: #{tpu_custom_call.1} parent=5 // pred_check_branch
        %413 = sbr.rel (%p411) target = $region44
      $region43: #{tpu_custom_call.1} parent=5 // pred_region
        %s414 = ssub.s32 %s11, 2
        // Predicated region
        $region45: #{tpu_custom_call.1} parent=43 // pred_check
          %p415 = pneg %p130
        $region46: #{tpu_custom_call.1} parent=43 // pred_check_branch
          %417 = sbr.rel (%p415) target = $region48
        $region47: #{tpu_custom_call.1} parent=43 // pred_region
          %s418 = sand.u32 %s115, 1
          %s419 = scalar_lea.sflag [#allocation4], %s418
          %s420 = sand.u32 %s115, 1
          %s421 = smul.addr %s420, 8
          %s422 = scalar_lea.vmem [#allocation3], %s421
          %423 = dma.done %s419, 128
        $region48: #{tpu_custom_call.1} parent=43 // pred_fallthru
          _
      $region44: #{tpu_custom_call.1} parent=5 // pred_fallthru
        _
    $region6: #{tpu_custom_call.1} parent=1 // loop_footer
      %s15 = sadd.s32 1, %s11
    $region7: #{tpu_custom_call.1} parent=1 // loop_footer_branch
      %10 = sbr.rel target = $region3
    $region8: #{tpu_custom_call.1} parent=1 // loop_exit
      _
    %424 = vsyncpa [#allocation4], 1
    %s425 = scalar_lea.sflag [#allocation4], 1
    %426 = vsyncpa %s425, 1

</llo_original>
